<compile_context>
chip_gen: v7x
topology: tpu7x:2x2x1
jax: 0.10.0
libtpu: 0.0.40
codegen_flags: <defaults>
</compile_context>

<pallas_src>
import functools
import math

import jax
import jax.numpy as jnp
import numpy as np
from jax.experimental import pallas as pl
from jax.experimental.pallas import tpu as pltpu


def _pick_tile(dim, target):
    """Largest tile <= target that divides dim and is a multiple of 8 (or the full dim)."""
    t = min(dim, target)
    while t > 1:
        if dim % t == 0 and (t % 8 == 0 or t == dim):
            return t
        t -= 1
    return dim


# ----------------------------------------------------------------------------
# Fused head-major projection kernel.
# Grid: (M//tm, stream in {from,to}, head).
#   xf/xt : (tm, H) bf16 row tiles of the two input streams (resident across s, h)
#   w     : (1, 1, H, 2d) bf16 fused per-head weights  [ Q|Vf ] or [ K|Vt ]
#           (query columns pre-scaled by 1/sqrt(d))
#   b     : (1, 1, 1, 2d) f32 fused per-head bias
#   o     : (1, 1, tm, 2d) bf16 head-major projection output
# ----------------------------------------------------------------------------
def _proj_kernel(xf_ref, xt_ref, w_ref, b_ref, o_ref):
    x = jnp.where(pl.program_id(1) == 0, xf_ref[...], xt_ref[...])        # select stream
    y = jnp.dot(x, w_ref[0, 0], preferred_element_type=jnp.float32) + b_ref[0, 0]
    o_ref[0, 0] = y.astype(o_ref.dtype)


# ----------------------------------------------------------------------------
# Per-(batch, head) attention kernel. Head-major layout, full-dim blocks.
#   x_ref   : (2, 1, 1, S, 2d) bf16 — stream 0 = [Q|Vf], stream 1 = [K|Vt]
#   mask_ref: (1, 1, 1, S) f32 additive mask (only present when has_mask)
#   o_ref   : (1, 1, S, d) context for this (batch, head)
# ----------------------------------------------------------------------------
def _attn_kernel(*refs, d, expanded, has_mask):
    if has_mask:
        x_ref, mask_ref, o_ref = refs
    else:
        x_ref, o_ref = refs
    S = x_ref.shape[3]

    # Static ref slices (zero runtime cost) instead of loading the whole slab.
    q = x_ref[0, 0, 0, :, :d]            # (S, d) bf16, pre-scaled by 1/sqrt(d)
    vf = x_ref[0, 0, 0, :, d:]           # (S, d) bf16
    k = x_ref[1, 0, 0, :, :d]
    vt = x_ref[1, 0, 0, :, d:]

    s = jnp.einsum("id,jd->ij", q, k, preferred_element_type=jnp.float32)  # (S, S) f32
    if has_mask:
        s = s + mask_ref[0, 0]                       # (1, S) broadcast over query rows
    s = s - jnp.max(s, axis=-1, keepdims=True)
    e = jnp.exp(s)
    p = e * pl.reciprocal(jnp.sum(e, axis=-1, keepdims=True), approx=True)
    p = p.astype(jnp.bfloat16)

    if expanded:
        # value[i,j] = vf[i] + vt[j]  and  rowsum(p) == 1  =>  ctx = vf + p @ vt
        ctx = vf.astype(jnp.float32) + jnp.dot(p, vt, preferred_element_type=jnp.float32)
    else:
        ctx = jnp.dot(p, vf + vt, preferred_element_type=jnp.float32)

    o_ref[0, 0] = ctx.astype(o_ref.dtype)


# ----------------------------------------------------------------------------
# One-time parameter preparation (hoisted out of the per-call path).
# Weights stored as (in, out) == PyTorch weight.T.
# ----------------------------------------------------------------------------
def prepare_params(params):
    nh = params["num_heads"]
    H = params["wq"].shape[0]
    d = H // nh
    scale = 1.0 / math.sqrt(d)

    def fuse(w_qk, b_qk, w_v, b_v, qk_scale):
        w = jnp.concatenate(
            [(w_qk * qk_scale).reshape(H, nh, d), w_v.reshape(H, nh, d)], axis=-1)
        w = jnp.transpose(w, (1, 0, 2))                                   # (nh, H, 2d)
        b = jnp.concatenate(
            [(b_qk * qk_scale).reshape(nh, 1, d), b_v.reshape(nh, 1, d)], axis=-1)
        return w, b                                                        # (nh, 1, 2d)

    w_from, b_from = fuse(params["wq"], params["bq"], params["wvf"], params["bvf"], scale)
    w_to, b_to = fuse(params["wk"], params["bk"], params["wvt"], params["bvt"], 1.0)

    return dict(
        num_heads=nh,
        head_dim=d,
        w=jnp.stack([w_from, w_to]).astype(jnp.bfloat16),   # (2, nh, H, 2d)
        b=jnp.stack([b_from, b_to]).astype(jnp.float32),    # (2, nh, 1, 2d)
    )


# ----------------------------------------------------------------------------
# Module forward
# ----------------------------------------------------------------------------
def path_self_attention(from_path_hidden, to_path_hidden, attention_mask, prepared,
                        *, use_expanded_value=True, head_mask=None):
    if head_mask is not None:
        raise NotImplementedError("head_mask is not supported")  # TODO(synk)

    B, S, H = from_path_hidden.shape
    nh = prepared["num_heads"]
    d = prepared["head_dim"]
    M = B * S
    tm = _pick_tile(M, 256)

    xf = from_path_hidden.reshape(M, H).astype(jnp.bfloat16)
    xt = to_path_hidden.reshape(M, H).astype(jnp.bfloat16)

    # --- fused head-major projections: one call for both streams and all heads ---
    proj = pl.pallas_call(
        _proj_kernel,
        grid=(M // tm, 2, nh),
        in_specs=[
            pl.BlockSpec((tm, H), lambda i, s, h: (i, 0)),
            pl.BlockSpec((tm, H), lambda i, s, h: (i, 0)),
            pl.BlockSpec((1, 1, H, 2 * d), lambda i, s, h: (s, h, 0, 0)),
            pl.BlockSpec((1, 1, 1, 2 * d), lambda i, s, h: (s, h, 0, 0)),
        ],
        out_specs=pl.BlockSpec((1, 1, tm, 2 * d), lambda i, s, h: (s, h, i, 0)),
        out_shape=jax.ShapeDtypeStruct((2, nh, M, 2 * d), jnp.bfloat16),
        compiler_params=pltpu.CompilerParams(
            dimension_semantics=("parallel", "arbitrary", "arbitrary"),
            vmem_limit_bytes=32 * 1024 * 1024),
    )(xf, xt, prepared["w"], prepared["b"])

    proj = proj.reshape(2, nh, B, S, 2 * d)          # free reshape, stays head-major

    # --- attention, gridded over (batch, head); mask path compiled out when None ---
    has_mask = attention_mask is not None
    kernel = functools.partial(
        _attn_kernel, d=d, expanded=use_expanded_value, has_mask=has_mask)

    in_specs = [pl.BlockSpec((2, 1, 1, S, 2 * d), lambda b, h: (0, h, b, 0, 0))]
    inputs = [proj]
    if has_mask:
        in_specs.append(pl.BlockSpec((1, 1, 1, S), lambda b, h: (b, 0, 0, 0)))
        inputs.append(attention_mask.astype(jnp.float32))

    ctx = pl.pallas_call(
        kernel,
        grid=(B, nh),
        in_specs=in_specs,
        out_specs=pl.BlockSpec((1, 1, S, d), lambda b, h: (h, b, 0, 0)),
        out_shape=jax.ShapeDtypeStruct((nh, B, S, d), from_path_hidden.dtype),
        compiler_params=pltpu.CompilerParams(
            dimension_semantics=("parallel", "parallel"),
            vmem_limit_bytes=32 * 1024 * 1024),
    )(*inputs)

    # layout plumbing only: head-major -> [B, S, H]
    return ctx.transpose(1, 2, 0, 3).reshape(B, S, H)


# ----------------------------------------------------------------------------
# Pure-JAX reference (literal transcription of the PyTorch forward, f32)
# ----------------------------------------------------------------------------
def reference_path_attention(from_h, to_h, attention_mask, p, use_expanded_value):
    B, S, H = from_h.shape
    nh = p["num_heads"]
    d = H // nh

    q = from_h @ p["wq"] + p["bq"]
    k = to_h @ p["wk"] + p["bk"]
    vf = from_h @ p["wvf"] + p["bvf"]
    vt = to_h @ p["wvt"] + p["bvt"]

    def heads4(x):
        return x.reshape(B, S, nh, d).transpose(0, 2, 1, 3)

    qh, kh = heads4(q), heads4(k)
    scores = jnp.einsum("bhid,bhjd->bhij", qh, kh) / math.sqrt(d)
    if attention_mask is not None:
        scores = scores + attention_mask
    probs = jax.nn.softmax(scores, axis=-1)

    if use_expanded_value:
        v = vf[:, :, None, :] + vt[:, None, :, :]                  # (B,S,S,H)
        vh = v.reshape(B, S, S, nh, d).transpose(0, 3, 1, 2, 4)    # (B,nh,S,S,d)
        ctx = jnp.einsum("bhij,bhijd->bhid", probs, vh)
    else:
        vh = heads4(vf + vt)
        ctx = jnp.einsum("bhij,bhjd->bhid", probs, vh)
    return ctx.transpose(0, 2, 1, 3).reshape(B, S, H)


# ----------------------------------------------------------------------------
# Parameter init (weights stored as (in, out) == PyTorch weight.T)
# ----------------------------------------------------------------------------
def init_params(key, H, nh):
    ks = jax.random.split(key, 8)

    def w(kk, shape):
        return 0.02 * jax.random.normal(kk, shape, jnp.float32)

    return dict(
        num_heads=nh,
        wq=w(ks[0], (H, H)), bq=w(ks[1], (H,)),
        wk=w(ks[2], (H, H)), bk=w(ks[3], (H,)),
        wvf=w(ks[4], (H, H)), bvf=w(ks[5], (H,)),
        wvt=w(ks[6], (H, H)), bvt=w(ks[7], (H,)),
    )


if __name__ == "__main__":
    # config: hidden_size=32, num_attention_heads=4, seq=8, batch=2
    B, S, H, NH = 2, 8, 32, 4

    key = jax.random.PRNGKey(0)
    k_from, k_to, k_mask, k_p = jax.random.split(key, 4)

    from_path_hidden = jax.random.normal(k_from, (B, S, H), jnp.float32)
    to_path_hidden = jax.random.normal(k_to, (B, S, H), jnp.float32)
    attention_mask = jnp.where(
        jax.random.uniform(k_mask, (B, 1, 1, S)) > 0.2, 0.0, -10000.0).astype(jnp.float32)

    params = init_params(k_p, H, NH)
    prepared = prepare_params(params)   # fused head-major bf16 weights, built once

    # custom_config['use_expanded_value'] is a global flag in the PyTorch file;
    # verify both branches, with and without an attention mask.
    for expanded in (True, False):
        for mask in (attention_mask, None):
            out = path_self_attention(from_path_hidden, to_path_hidden, mask, prepared,
                                      use_expanded_value=expanded)
            out = jax.block_until_ready(out)
            ref = reference_path_attention(from_path_hidden, to_path_hidden, mask,
                                           params, expanded)
            np.testing.assert_allclose(np.asarray(out), np.asarray(ref),
                                       rtol=2e-2, atol=2e-2)

    print("KERNEL_OK")
</pallas_src>

<mosaic_0001>
module attributes {stable_mosaic.version = 11 : i64} {
  func.func @_proj_kernel(%arg0: i32, %arg1: i32, %arg2: i32, %arg3: memref<16x32xbf16, #tpu.memory_space<vmem>>, %arg4: memref<16x32xbf16, #tpu.memory_space<vmem>>, %arg5: memref<1x1x32x16xbf16, #tpu.memory_space<vmem>>, %arg6: memref<1x1x1x16xf32, #tpu.memory_space<vmem>>, %arg7: memref<1x1x16x16xbf16, #tpu.memory_space<vmem>>) attributes {dimension_semantics = [#tpu.dimension_semantics<parallel>, #tpu.dimension_semantics<arbitrary>, #tpu.dimension_semantics<arbitrary>], iteration_bounds = array<i64: 1, 2, 4>, scalar_prefetch = 0 : i64, scratch_operands = 0 : i64, tpu.core_type = #tpu.core_type<tc>, window_params = [{transform_indices = @transform_0, window_bounds = array<i64: 16, 32>}, {transform_indices = @transform_1, window_bounds = array<i64: 16, 32>}, {transform_indices = @transform_2, window_bounds = array<i64: 1, 1, 32, 16>}, {transform_indices = @transform_3, window_bounds = array<i64: 1, 1, 1, 16>}, {transform_indices = @transform_4, window_bounds = array<i64: 1, 1, 16, 16>}]} {
    %c0_i32 = arith.constant 0 : i32
    %0 = arith.cmpi eq, %arg1, %c0_i32 : i32
    %c0 = arith.constant 0 : index
    %c0_0 = arith.constant 0 : index
    %1 = vector.load %arg3[%c0, %c0_0] : memref<16x32xbf16, #tpu.memory_space<vmem>>, vector<16x32xbf16>
    %c0_1 = arith.constant 0 : index
    %c0_2 = arith.constant 0 : index
    %2 = vector.load %arg4[%c0_1, %c0_2] : memref<16x32xbf16, #tpu.memory_space<vmem>>, vector<16x32xbf16>
    %3 = arith.select %0, %1, %2 : vector<16x32xbf16>
    %c0_3 = arith.constant 0 : index
    %c0_4 = arith.constant 0 : index
    %c0_5 = arith.constant 0 : index
    %c0_6 = arith.constant 0 : index
    %4 = vector.load %arg5[%c0_3, %c0_4, %c0_5, %c0_6] : memref<1x1x32x16xbf16, #tpu.memory_space<vmem>>, vector<1x1x32x16xbf16>
    %5 = vector.shape_cast %4 : vector<1x1x32x16xbf16> to vector<32x16xbf16>
    %cst = arith.constant dense<0.000000e+00> : vector<16x16xf32>
    %6 = tpu.matmul %3, %5, %cst {dimension_numbers = #tpu.dot_dimension_numbers<[1], [0], [0], [1], [0, 0, 1, 1], [], []>} : vector<16x32xbf16>, vector<32x16xbf16>, vector<16x16xf32> -> vector<16x16xf32>
    %c0_7 = arith.constant 0 : index
    %c0_8 = arith.constant 0 : index
    %c0_9 = arith.constant 0 : index
    %c0_10 = arith.constant 0 : index
    %7 = vector.load %arg6[%c0_7, %c0_8, %c0_9, %c0_10] : memref<1x1x1x16xf32, #tpu.memory_space<vmem>>, vector<1x1x1x16xf32>
    %8 = vector.shape_cast %7 : vector<1x1x1x16xf32> to vector<1x16xf32>
    %9 = vector.broadcast %8 : vector<1x16xf32> to vector<16x16xf32>
    %10 = arith.addf %6, %9 : vector<16x16xf32>
    %11 = arith.truncf %10 : vector<16x16xf32> to vector<16x16xbf16>
    %c0_11 = arith.constant 0 : index
    %c0_12 = arith.constant 0 : index
    %c0_13 = arith.constant 0 : index
    %c0_14 = arith.constant 0 : index
    %12 = vector.load %arg7[%c0_11, %c0_12, %c0_13, %c0_14] : memref<1x1x16x16xbf16, #tpu.memory_space<vmem>>, vector<1x1x16x16xbf16>
    %13 = vector.shape_cast %12 : vector<1x1x16x16xbf16> to vector<16x16xbf16>
    %14 = vector.shape_cast %11 : vector<16x16xbf16> to vector<1x1x16x16xbf16>
    tpu.vector_store %arg7[%c0_11, %c0_12, %c0_13, %c0_14], %14 {strides = array<i32>} : memref<1x1x16x16xbf16, #tpu.memory_space<vmem>>, vector<1x1x16x16xbf16>,
    return
  }
  func.func @transform_0(%arg0: i32, %arg1: i32, %arg2: i32) -> (i32, i32) {
    %c0_i32 = arith.constant 0 : i32
    %c0_i32_0 = arith.constant 0 : i32
    return %arg0, %c0_i32 : i32, i32
  }
  func.func @transform_1(%arg0: i32, %arg1: i32, %arg2: i32) -> (i32, i32) {
    %c0_i32 = arith.constant 0 : i32
    %c0_i32_0 = arith.constant 0 : i32
    return %arg0, %c0_i32 : i32, i32
  }
  func.func @transform_2(%arg0: i32, %arg1: i32, %arg2: i32) -> (i32, i32, i32, i32) {
    %c0_i32 = arith.constant 0 : i32
    %c0_i32_0 = arith.constant 0 : i32
    %c0_i32_1 = arith.constant 0 : i32
    return %arg1, %arg2, %c0_i32, %c0_i32_0 : i32, i32, i32, i32
  }
  func.func @transform_3(%arg0: i32, %arg1: i32, %arg2: i32) -> (i32, i32, i32, i32) {
    %c0_i32 = arith.constant 0 : i32
    %c0_i32_0 = arith.constant 0 : i32
    %c0_i32_1 = arith.constant 0 : i32
    return %arg1, %arg2, %c0_i32, %c0_i32_0 : i32, i32, i32, i32
  }
  func.func @transform_4(%arg0: i32, %arg1: i32, %arg2: i32) -> (i32, i32, i32, i32) {
    %c0_i32 = arith.constant 0 : i32
    %c0_i32_0 = arith.constant 0 : i32
    return %arg1, %arg2, %arg0, %c0_i32 : i32, i32, i32, i32
  }
}

</mosaic_0001>

<llo_original>
// kernel: tpu_custom_call.1
$region0: #{tpu_custom_call.1}
  #allocation0 [shape = 'u32[]', space=smem, size = 0x4, offset = 0x4, fixed_abs, tag = 'smem constant byte address 0x4 - core index']
  #allocation1 [shape = 'u32[144,128]{1,0:T(1,128)}', space=vmem, size = 0x12000, scoped, tag = 'internal scratch']
  %s0 = inlined_call_operand.vmem [shape: bf16[16,32], index: 0, kind: input, shape index: {}]
  %s1 = inlined_call_operand.vmem [shape: bf16[16,32], index: 1, kind: input, shape index: {}]
  %s2 = inlined_call_operand.vmem [shape: bf16[2,4,32,16], index: 2, kind: input, shape index: {}]
  %s3 = inlined_call_operand.vmem [shape: f32[2,4,1,16], index: 3, kind: input, shape index: {}]
  %s4 = inlined_call_operand.hbm [shape: bf16[2,4,16,16], index: 4, kind: output, shape index: {}]
  %s5 = sld [smem:[#allocation0]]
  $region49: #{tpu_custom_call.1} parent=0
    _
  %s7 = ssub.s32 1, %s5
  %s8 = scalar_select 0, %s7, %s5
  $region1: #{tpu_custom_call.1} parent=0
    #allocation2 [shape = 'u8[8192]{0}', space=vmem, size = 0x2000, scoped, tag = 'output window, operand 0']
    #allocation3 [shape = 's32[2]{0}', space=sflag, size = 0x8, scoped, tag = 'scoped memory for tpu_custom_call.1']
    %9 = vsyncpa [#allocation3], 0
    %s10 = scalar_lea.sflag [#allocation3], 1
    %11 = vsyncpa %s10, 0
    loop: start=0, step=1, limit=10
    $region2: #{tpu_custom_call.1} parent=1 // loop_pre_header
      _
    $region3: #{tpu_custom_call.1} parent=1 // loop_header
      %s13 = sphi 0, %s17
      %p14 = scmp.ge.s32.totalorder %s13, 10
      %s20 = sphi 0, %s39
      %s21 = sphi 0, %s35
      %s22 = sphi 0, %s31
      %s23 = sphi 0, %s20
      %s24 = sphi 0, %s21
      %s25 = sphi 0, %s22
      %s26 = sphi 0, %s23
      %s27 = sphi 0, %s24
      %s28 = sphi 0, %s25
      %s42 = sphi 0, %s44
      %s45 = sphi 0, %s42
      %s46 = sphi 0, %s45
      %s62 = sphi 0, %s46
      %s68 = sphi 0, %s70
      %s71 = sphi 0, %s68
      %s72 = sphi 0, %s71
      %s88 = sphi 0, %s72
      %s96 = sphi 0, %s98
      %s99 = sphi 0, %s96
      %s100 = sphi 0, %s99
      %s116 = sphi 0, %s100
      %s124 = sphi 0, %s126
      %s127 = sphi 0, %s124
      %s128 = sphi 0, %s127
      %s144 = sphi 0, %s128
      %s154 = sphi 0, %s156
      %s157 = sphi 0, %s154
      %s158 = sphi 0, %s157
      %s174 = sphi 0, %s158
    $region4: #{tpu_custom_call.1} parent=1 // loop_header_branch
      %16 = sbr.rel (%p14) target = $region8
    $region5: #{tpu_custom_call.1} parent=1 // loop_body
      %s18 = ssub.s32 %s13, 1
      %s19 = ssub.s32 %s13, 2
      %s29 = sadd.s32 1, %s22
      %p30 = scmp.ge.s32.totalorder %s29, 4
      %s31 = scalar_select %p30, 0, %s29
      %s32 = sadd.s32 1, %s21
      %s33 = scalar_select %p30, %s32, %s21
      %p34 = scmp.ge.s32.totalorder %s33, 2
      %s35 = scalar_select %p34, 0, %s33
      %s36 = sadd.s32 1, %s20
      %s37 = scalar_select %p34, %s36, %s20
      %p38 = scmp.ge.s32.totalorder %s37, 1
      %s39 = scalar_select %p38, 0, %s37
      %s40 = ssub.s32 %s20, %s39
      %p41 = scmp.eq.s32.totalorder %s40, 0
      %s43 = sadd.s32 %s42, 1
      %s44 = scalar_select %p41, %s42, %s43
      %p47 = pneg %p41
      %p48 = scmp.eq.s32.totalorder %s13, 7
      %p49 = por %p47, %p48
      %p50 = scmp.ne.s32.totalorder %s42, %s45
      %p51 = scmp.eq.s32.totalorder %s13, 0
      %p52 = por %p50, %p51
      %p53 = scmp.ne.s32.totalorder %s42, %s45
      %p54 = scmp.eq.s32.totalorder %s18, 7
      %p55 = por %p53, %p54
      %p56 = scmp.ne.s32.totalorder %s45, %s46
      %p57 = scmp.eq.s32.totalorder %s18, 0
      %p58 = por %p56, %p57
      %p59 = scmp.ne.s32.totalorder %s45, %s46
      %p60 = scmp.eq.s32.totalorder %s19, 7
      %p61 = por %p59, %p60
      %p63 = scmp.ne.s32.totalorder %s46, %s62
      %p64 = scmp.eq.s32.totalorder %s19, 0
      %p65 = por %p63, %p64
      %s66 = ssub.s32 %s20, %s39
      %p67 = scmp.eq.s32.totalorder %s66, 0
      %s69 = sadd.s32 %s68, 1
      %s70 = scalar_select %p67, %s68, %s69
      %p73 = pneg %p67
      %p74 = scmp.eq.s32.totalorder %s13, 7
      %p75 = por %p73, %p74
      %p76 = scmp.ne.s32.totalorder %s68, %s71
      %p77 = scmp.eq.s32.totalorder %s13, 0
      %p78 = por %p76, %p77
      %p79 = scmp.ne.s32.totalorder %s68, %s71
      %p80 = scmp.eq.s32.totalorder %s18, 7
      %p81 = por %p79, %p80
      %p82 = scmp.ne.s32.totalorder %s71, %s72
      %p83 = scmp.eq.s32.totalorder %s18, 0
      %p84 = por %p82, %p83
      %p85 = scmp.ne.s32.totalorder %s71, %s72
      %p86 = scmp.eq.s32.totalorder %s19, 7
      %p87 = por %p85, %p86
      %p89 = scmp.ne.s32.totalorder %s72, %s88
      %p90 = scmp.eq.s32.totalorder %s19, 0
      %p91 = por %p89, %p90
      %s92 = ssub.s32 %s21, %s35
      %s93 = ssub.s32 %s22, %s31
      %s94 = sor.u32 %s92, %s93
      %p95 = scmp.eq.s32.totalorder %s94, 0
      %s97 = sadd.s32 %s96, 1
      %s98 = scalar_select %p95, %s96, %s97
      %p101 = pneg %p95
      %p102 = scmp.eq.s32.totalorder %s13, 7
      %p103 = por %p101, %p102
      %p104 = scmp.ne.s32.totalorder %s96, %s99
      %p105 = scmp.eq.s32.totalorder %s13, 0
      %p106 = por %p104, %p105
      %p107 = scmp.ne.s32.totalorder %s96, %s99
      %p108 = scmp.eq.s32.totalorder %s18, 7
      %p109 = por %p107, %p108
      %p110 = scmp.ne.s32.totalorder %s99, %s100
      %p111 = scmp.eq.s32.totalorder %s18, 0
      %p112 = por %p110, %p111
      %p113 = scmp.ne.s32.totalorder %s99, %s100
      %p114 = scmp.eq.s32.totalorder %s19, 7
      %p115 = por %p113, %p114
      %p117 = scmp.ne.s32.totalorder %s100, %s116
      %p118 = scmp.eq.s32.totalorder %s19, 0
      %p119 = por %p117, %p118
      %s120 = ssub.s32 %s21, %s35
      %s121 = ssub.s32 %s22, %s31
      %s122 = sor.u32 %s120, %s121
      %p123 = scmp.eq.s32.totalorder %s122, 0
      %s125 = sadd.s32 %s124, 1
      %s126 = scalar_select %p123, %s124, %s125
      %p129 = pneg %p123
      %p130 = scmp.eq.s32.totalorder %s13, 7
      %p131 = por %p129, %p130
      %p132 = scmp.ne.s32.totalorder %s124, %s127
      %p133 = scmp.eq.s32.totalorder %s13, 0
      %p134 = por %p132, %p133
      %p135 = scmp.ne.s32.totalorder %s124, %s127
      %p136 = scmp.eq.s32.totalorder %s18, 7
      %p137 = por %p135, %p136
      %p138 = scmp.ne.s32.totalorder %s127, %s128
      %p139 = scmp.eq.s32.totalorder %s18, 0
      %p140 = por %p138, %p139
      %p141 = scmp.ne.s32.totalorder %s127, %s128
      %p142 = scmp.eq.s32.totalorder %s19, 7
      %p143 = por %p141, %p142
      %p145 = scmp.ne.s32.totalorder %s128, %s144
      %p146 = scmp.eq.s32.totalorder %s19, 0
      %p147 = por %p145, %p146
      %s148 = ssub.s32 %s21, %s35
      %s149 = ssub.s32 %s22, %s31
      %s150 = sor.u32 %s148, %s149
      %s151 = ssub.s32 %s20, %s39
      %s152 = sor.u32 %s150, %s151
      %p153 = scmp.eq.s32.totalorder %s152, 0
      %s155 = sadd.s32 %s154, 1
      %s156 = scalar_select %p153, %s154, %s155
      %p159 = pneg %p153
      %p160 = scmp.eq.s32.totalorder %s13, 7
      %p161 = por %p159, %p160
      %p162 = scmp.ne.s32.totalorder %s154, %s157
      %p163 = scmp.eq.s32.totalorder %s13, 0
      %p164 = por %p162, %p163
      %p165 = scmp.ne.s32.totalorder %s154, %s157
      %p166 = scmp.eq.s32.totalorder %s18, 7
      %p167 = por %p165, %p166
      %p168 = scmp.ne.s32.totalorder %s157, %s158
      %p169 = scmp.eq.s32.totalorder %s18, 0
      %p170 = por %p168, %p169
      %p171 = scmp.ne.s32.totalorder %s157, %s158
      %p172 = scmp.eq.s32.totalorder %s19, 7
      %p173 = por %p171, %p172
      %p175 = scmp.ne.s32.totalorder %s158, %s174
      %p176 = scmp.eq.s32.totalorder %s19, 0
      %p177 = por %p175, %p176
      %p178 = scmp.le.s32.totalorder 1, %s13
      %p179 = scmp.lt.s32.totalorder %s13, 9
      %p180 = pnand %p178, %p179
      %p181 = pneg %p180
      // Predicated region
      $region9: #{tpu_custom_call.1} parent=5 // pred_check
        _
      $region10: #{tpu_custom_call.1} parent=5 // pred_check_branch
        %183 = sbr.rel (%p180) target = $region12
      $region11: #{tpu_custom_call.1} parent=5 // pred_region
        %s184 = ssub.s32 %s13, 1
        // Predicated region
        $region13: #{tpu_custom_call.1} parent=11 // pred_check
          %p185 = pneg %p58
        $region14: #{tpu_custom_call.1} parent=11 // pred_check_branch
          %187 = sbr.rel (%p185) target = $region16
        $region15: #{tpu_custom_call.1} parent=11 // pred_region
          %s188 = smul.u32 2, %s23
          %p189 = scmp.lt.s32.totalorder %s188, 1
          %s190 = scalar_select %p189, %s188, 1
          %s191 = smul.addr %s190, 4
          %s192 = scalar_lea.vmem %s0, %s191
          %s193 = smul.u32 2, %s23
        $region16: #{tpu_custom_call.1} parent=11 // pred_fallthru
          _
        // Predicated region
        $region17: #{tpu_custom_call.1} parent=11 // pred_check
          %p194 = pneg %p84
        $region18: #{tpu_custom_call.1} parent=11 // pred_check_branch
          %196 = sbr.rel (%p194) target = $region20
        $region19: #{tpu_custom_call.1} parent=11 // pred_region
          %s197 = smul.u32 2, %s23
          %p198 = scmp.lt.s32.totalorder %s197, 1
          %s199 = scalar_select %p198, %s197, 1
          %s200 = smul.addr %s199, 4
          %s201 = scalar_lea.vmem %s1, %s200
          %s202 = smul.u32 2, %s23
        $region20: #{tpu_custom_call.1} parent=11 // pred_fallthru
          _
      $region12: #{tpu_custom_call.1} parent=5 // pred_fallthru
        _
      %p203 = scmp.lt.s32.totalorder %s13, 8
      // Predicated region
      $region21: #{tpu_custom_call.1} parent=5 // pred_check
        %p204 = pneg %p203
      $region22: #{tpu_custom_call.1} parent=5 // pred_check_branch
        %206 = sbr.rel (%p204) target = $region24
      $region23: #{tpu_custom_call.1} parent=5 // pred_region
        // Predicated region
        $region25: #{tpu_custom_call.1} parent=23 // pred_check
          %p207 = pneg %p106
        $region26: #{tpu_custom_call.1} parent=23 // pred_check_branch
          %209 = sbr.rel (%p207) target = $region28
        $region27: #{tpu_custom_call.1} parent=23 // pred_region
          %p210 = scmp.lt.s32.totalorder %s21, 1
          %s211 = scalar_select %p210, %s21, 1
          %p212 = scmp.lt.s32.totalorder %s22, 3
          %s213 = scalar_select %p212, %s22, 3
          %s214 = smul.addr %s213, 4
          %s215 = smul.addr %s211, 16
          %s216 = sadd.s32 %s214, %s215
          %s217 = smul.addr %s216, 4
          %s218 = scalar_lea.vmem %s2, %s217
        $region28: #{tpu_custom_call.1} parent=23 // pred_fallthru
          _
        // Predicated region
        $region29: #{tpu_custom_call.1} parent=23 // pred_check
          %p219 = pneg %p134
        $region30: #{tpu_custom_call.1} parent=23 // pred_check_branch
          %221 = sbr.rel (%p219) target = $region32
        $region31: #{tpu_custom_call.1} parent=23 // pred_region
          %p222 = scmp.lt.s32.totalorder %s21, 1
          %s223 = scalar_select %p222, %s21, 1
          %p224 = scmp.lt.s32.totalorder %s22, 3
          %s225 = scalar_select %p224, %s22, 3
          %s226 = smul.addr %s223, 4
          %s227 = sadd.s32 %s225, %s226
          %s228 = scalar_lea.vmem %s3, %s227
        $region32: #{tpu_custom_call.1} parent=23 // pred_fallthru
          _
      $region24: #{tpu_custom_call.1} parent=5 // pred_fallthru
        _
      %p229 = scmp.le.s32.totalorder 1, %s13
      %p230 = scmp.lt.s32.totalorder %s13, 9
      %p231 = pnand %p229, %p230
      %p232 = pneg %p231
      // Predicated region
      $region33: #{tpu_custom_call.1} parent=5 // pred_check
        _
      $region34: #{tpu_custom_call.1} parent=5 // pred_check_branch
        %234 = sbr.rel (%p231) target = $region36
      $region35: #{tpu_custom_call.1} parent=5 // pred_region
        %s235 = ssub.s32 %s13, 1
        %s236 = smul.u32 2, %s23
        %p237 = scmp.lt.s32.totalorder %s236, 1
        %s238 = scalar_select %p237, %s236, 1
        %s239 = smul.addr %s238, 4
        %s240 = scalar_lea.vmem %s0, %s239
        %p241 = pneg %p58
        %p242 = pneg %p55
        %s243 = smul.u32 2, %s23
        %p244 = scmp.lt.s32.totalorder %s243, 1
        %s245 = scalar_select %p244, %s243, 1
        %s246 = smul.addr %s245, 4
        %s247 = scalar_lea.vmem %s1, %s246
        %p248 = pneg %p84
        %p249 = pneg %p81
        %p250 = scmp.lt.s32.totalorder %s24, 1
        %s251 = scalar_select %p250, %s24, 1
        %p252 = scmp.lt.s32.totalorder %s25, 3
        %s253 = scalar_select %p252, %s25, 3
        %s254 = smul.addr %s253, 4
        %s255 = smul.addr %s251, 16
        %s256 = sadd.s32 %s254, %s255
        %s257 = smul.addr %s256, 4
        %s258 = scalar_lea.vmem %s2, %s257
        %p259 = pneg %p112
        %p260 = pneg %p109
        %p261 = scmp.lt.s32.totalorder %s24, 1
        %s262 = scalar_select %p261, %s24, 1
        %p263 = scmp.lt.s32.totalorder %s25, 3
        %s264 = scalar_select %p263, %s25, 3
        %s265 = smul.addr %s262, 4
        %s266 = sadd.s32 %s264, %s265
        %s267 = scalar_lea.vmem %s3, %s266
        %p268 = pneg %p140
        %p269 = pneg %p137
        %p270 = pneg %p170
        %p271 = pneg %p167
        %s272 = sand.u32 %s157, 1
        %s273 = scalar_lea.sflag [#allocation3], %s272
        %s274 = sand.u32 %s157, 1
        %s275 = smul.addr %s274, 8
        %s276 = scalar_lea.vmem [#allocation2], %s275
        %s277 = smul.u32 2, %s23
        %p278 = scmp.lt.s32.totalorder %s277, 1
        %s279 = scalar_select %p278, %s277, 1
        %s280 = smul.addr %s279, 4
        %s281 = scalar_lea.vmem %s0, %s280
        %s282 = smul.u32 2, %s23
        %s283 = smul.u32 2, %s23
        %p284 = scmp.lt.s32.totalorder %s283, 1
        %s285 = scalar_select %p284, %s283, 1
        %s286 = smul.addr %s285, 4
        %s287 = scalar_lea.vmem %s1, %s286
        %s288 = smul.u32 2, %s23
        %p289 = scmp.lt.s32.totalorder %s24, 1
        %s290 = scalar_select %p289, %s24, 1
        %p291 = scmp.lt.s32.totalorder %s25, 3
        %s292 = scalar_select %p291, %s25, 3
        %s293 = smul.addr %s292, 4
        %s294 = smul.addr %s290, 16
        %s295 = sadd.s32 %s293, %s294
        %s296 = smul.addr %s295, 4
        %s297 = scalar_lea.vmem %s2, %s296
        %p298 = scmp.lt.s32.totalorder %s24, 1
        %s299 = scalar_select %p298, %s24, 1
        %p300 = scmp.lt.s32.totalorder %s25, 3
        %s301 = scalar_select %p300, %s25, 3
        %s302 = smul.addr %s299, 4
        %s303 = sadd.s32 %s301, %s302
        %s304 = scalar_lea.vmem %s3, %s303
        %s305 = smul.u32 2, %s23
        %p307 = scmp.eq.s32.totalorder %s24, 0
        %v308 = vld [vmem:[%s281] sm:$0xf]
        %v309 = vld [vmem:[%s281 + $0x4] sm:$0xf]
        %v310 = vld [vmem:[%s287] sm:$0xf]
        %v311 = vld [vmem:[%s287 + $0x4] sm:$0xf]
        %s312 = scalar_select %p307, 1, 0
        %v313 = vstv %s312
        %vm314 = vcmp.eq.s32.totalorder %v313, 1
        %v315 = vsel %vm314, %v308, %v310
        %v316 = vsel %vm314, %v309, %v311
        %v317 = vld [vmem:[%s297] sm:$0xf]
        %v318 = vld [vmem:[%s297 + $0x4] sm:$0xf]
        %v319 = vld [vmem:[%s297 + $0x8] sm:$0xf]
        %v320 = vld [vmem:[%s297 + $0xc] sm:$0xf]
        %v321 = vld [vmem:[%s304] sm:$0x1]
        %v323 = vlaneseq
        %v324 = vshrl.u32 %v323, 7
        %v325 = vsub.s32 0, %v324
        %v326 = vrot.slane %v321, %v325
        %v330 = vunpack.c.l.b16 %v315
        %v331 = vunpack.c.l.b16 %v316
        %v332 = vpack.c.b16 %v331, %v330
        %v337 = vunpack.c.l.b16 %v317
        %v338 = vunpack.c.l.b16 %v318
        %v339 = vunpack.c.l.b16 %v319
        %v340 = vunpack.c.l.b16 %v320
        %v341 = vpack.c.b16 %v338, %v337
        %v342 = vpack.c.b16 %v340, %v339
        %vm345 = vcmask 261120
        %v347 = vsel %vm345, %v332, 0
        %349 = vmatprep.subr.bf16.mxu0 0
        %350 = vmatpush1.bf16.msra.mxu0 %v341
        %351 = vmatprep.subr.bf16.mxu0 0
        %352 = vmatpush1.bf16.msra.mxu0 %v342
        %353 = vmatprep.subr.bf16.mxu0 0
        %354 = vmatpush1.bf16.msra.mxu0 0
        %355 = vmatprep.subr.bf16.mxu0 0
        %356 = vmatpush1.bf16.msra.mxu0 0
        %357 = vmatprep.subr.bf16.mxu0 0
        %358 = vmatpush1.bf16.msra.mxu0 0
        %359 = vmatprep.subr.bf16.mxu0 0
        %360 = vmatpush1.bf16.msra.mxu0 0
        %361 = vmatprep.subr.bf16.mxu0 0
        %362 = vmatpush1.bf16.msra.mxu0 0
        %363 = vmatprep.subr.bf16.mxu0 0
        %364 = vmatpush1.bf16.msra.mxu0 0
        %365 = vmatprep.subr.bf16.mxu0 0
        %366 = vmatpush1.bf16.msra.mxu0 0
        %367 = vmatprep.subr.bf16.mxu0 0
        %368 = vmatpush1.bf16.msra.mxu0 0
        %369 = vmatprep.subr.bf16.mxu0 0
        %370 = vmatpush1.bf16.msra.mxu0 0
        %371 = vmatprep.subr.bf16.mxu0 0
        %372 = vmatpush1.bf16.msra.mxu0 0
        %373 = vmatprep.subr.bf16.mxu0 0
        %374 = vmatpush1.bf16.msra.mxu0 0
        %375 = vmatprep.subr.bf16.mxu0 0
        %376 = vmatpush1.bf16.msra.mxu0 0
        %377 = vmatprep.subr.bf16.mxu0 0
        %378 = vmatpush1.bf16.msra.mxu0 0
        %379 = vmatprep.subr.bf16.mxu0 0
        %380 = vmatpush1.bf16.msra.mxu0 0
        %381 = vmatprep.mubr.bf16.mxu0 0
        %382 = vmatmul.mubr.bf16.gmra.mrb[0].mxu0 %v347
        %v383 = vpop.f32.mrb[0].mxu0
        %v384 = vadd.f32 %v326, %v383
        %v385 = vpop.f32.mrb[0].mxu0
        %v386 = vpop.f32.mrb[0].mxu0
        %v387 = vadd.f32 %v326, %v386
        %v388 = vpop.f32.mrb[0].mxu0
        %389 = vdwg.mxu0
        %v390 = vpack.c.bf16 %v387, %v384
        %v392 = vunpack.c.l.b16 %v390
        %v393 = vunpack.c.h.b16 %v390
        %v394 = vpack.c.b16 %v392, %v392
        %v395 = vpack.c.b16 %v393, %v393
        %vm398 = vcmask 125952
        %399 = vst.msk [vmem:[%s276] sm:$0xf] %vm398, %v394
        %400 = vst.msk [vmem:[%s276 + $0x4] sm:$0xf] %vm398, %v395
        %s401 = sand.u32 %s157, 1
        %s402 = scalar_lea.sflag [#allocation3], %s401
        %s403 = sand.u32 %s157, 1
        %s404 = smul.addr %s403, 8
        %s405 = scalar_lea.vmem [#allocation2], %s404
        // Predicated region
        $region37: #{tpu_custom_call.1} parent=35 // pred_check
          %p406 = pneg %p167
        $region38: #{tpu_custom_call.1} parent=35 // pred_check_branch
          %408 = sbr.rel (%p406) target = $region40
        $region39: #{tpu_custom_call.1} parent=35 // pred_region
          %s409 = smul.u32 2, %s23
          %s411 = ssub.s32 128, 128
          %412 = vsyncadd %s402, %s411
          %s413 = smul.addr %s25, 2
          %s414 = sadd.s32 %s409, %s413
          %s415 = smul.addr %s24, 8
          %s416 = sadd.s32 %s414, %s415
          %s417 = smul.addr %s416, 64
          %s418 = scalar_lea.hbm %s4, %s417
          %s419 = sshll.u32 %s405, 4
          %s420 = int_to_ptr.vmem [resolvable:$true] %s419
          %425 = dma.vmem_to_hbm [thread:$0]  %s420, 128, %s418, %s402, 64, 64, 4
        $region40: #{tpu_custom_call.1} parent=35 // pred_fallthru
          _
      $region36: #{tpu_custom_call.1} parent=5 // pred_fallthru
        _
      %p426 = scmp.le.s32.totalorder 2, %s13
      // Predicated region
      $region41: #{tpu_custom_call.1} parent=5 // pred_check
        %p427 = pneg %p426
      $region42: #{tpu_custom_call.1} parent=5 // pred_check_branch
        %429 = sbr.rel (%p427) target = $region44
      $region43: #{tpu_custom_call.1} parent=5 // pred_region
        %s430 = ssub.s32 %s13, 2
        // Predicated region
        $region45: #{tpu_custom_call.1} parent=43 // pred_check
          %p431 = pneg %p173
        $region46: #{tpu_custom_call.1} parent=43 // pred_check_branch
          %433 = sbr.rel (%p431) target = $region48
        $region47: #{tpu_custom_call.1} parent=43 // pred_region
          %s434 = sand.u32 %s158, 1
          %s435 = scalar_lea.sflag [#allocation3], %s434
          %s436 = sand.u32 %s158, 1
          %s437 = smul.addr %s436, 8
          %s438 = scalar_lea.vmem [#allocation2], %s437
          %439 = dma.done %s435, 128
        $region48: #{tpu_custom_call.1} parent=43 // pred_fallthru
          _
      $region44: #{tpu_custom_call.1} parent=5 // pred_fallthru
        _
    $region6: #{tpu_custom_call.1} parent=1 // loop_footer
      %s17 = sadd.s32 1, %s13
    $region7: #{tpu_custom_call.1} parent=1 // loop_footer_branch
      %12 = sbr.rel target = $region3
    $region8: #{tpu_custom_call.1} parent=1 // loop_exit
      _
    %440 = vsyncpa [#allocation3], 1
    %s441 = scalar_lea.sflag [#allocation3], 1
    %442 = vsyncpa %s441, 1

</llo_original>
